<compile_context>
chip_gen: v7x
topology: tpu7x:2x2x1
jax: 0.10.0
libtpu: 0.0.40
codegen_flags: <defaults>
</compile_context>

<pallas_src>
import functools

import jax
import jax.numpy as jnp
from jax.experimental import pallas as pl
from jax.experimental.pallas import tpu as pltpu

_LANE = 128              # pad the 5-wide output to a full lane width
_TB_MAX = 2048           # max batch tile (footprint ~1-2 MiB, fits every gen)
_DUAL_TC_MIN_TILE = 256  # if B >= 2x this, force >= 2 tiles for v7x dual-TC
_SUBLANE = 16            # bf16 sublane tile (also satisfies f32's 8)


def _ceil_div(a, b):
    return -(-a // b)


def _round_up(a, m):
    return _ceil_div(a, m) * m


def _dqn_kernel(x_ref, w1_ref, b1_ref, w2_ref, b2_ref, w3_ref, b3_ref, o_ref):
    """Fused 3-layer MLP: relu(relu(x@W1+b1)@W2+b2)@W3+b3 for one batch tile.

    Weights are bf16 (bf16-native MXU path); accumulation/bias/ReLU are f32;
    the output store is a lane-dense bf16 tile.
    """
    x = x_ref[...].astype(jnp.bfloat16)

    h1 = jnp.dot(x, w1_ref[...], preferred_element_type=jnp.float32) + b1_ref[...]
    h1 = jnp.maximum(h1, 0.0)

    h2 = (
        jnp.dot(h1.astype(jnp.bfloat16), w2_ref[...],
                preferred_element_type=jnp.float32)
        + b2_ref[...]
    )
    h2 = jnp.maximum(h2, 0.0)

    q = (
        jnp.dot(h2.astype(jnp.bfloat16), w3_ref[...],
                preferred_element_type=jnp.float32)
        + b3_ref[...]
    )
    # Lane-dense (TB, 128) bf16 store; padded columns of W3/b3 are zero.
    o_ref[...] = q.astype(o_ref.dtype)


@functools.partial(jax.jit, static_argnames=("action_size",))
def dqn_forward(x, w1, b1, w2, b2, w3p, b3p, *, action_size):
    """x: [B, state_size] f32. w3p/b3p are lane-padded to 128 output columns.

    Returns [B, action_size] f32 Q-values.
    """
    B, state_size = x.shape
    out_pad = w3p.shape[1]  # 128

    # Static (trace-time) tiling decision:
    #  * split the batch as evenly as possible into <= _TB_MAX-row tiles
    #    (minimizes dead-row padding for remainder batches),
    #  * force >= 2 tiles for large batches so v7x can use both TensorCores.
    n_tiles = _ceil_div(B, _TB_MAX)
    if B >= 2 * _DUAL_TC_MIN_TILE:
        n_tiles = max(n_tiles, 2)
    tile_b = max(_SUBLANE, _round_up(_ceil_div(B, n_tiles), _SUBLANE))
    B_pad = n_tiles * tile_b

    # Only pad when actually needed (remainder case); no copy otherwise.
    if B_pad != B:
        x = jnp.pad(x, ((0, B_pad - B), (0, 0)))

    const = lambda shape: pl.BlockSpec(shape, lambda i: (0, 0))

    out = pl.pallas_call(
        _dqn_kernel,
        out_shape=jax.ShapeDtypeStruct((B_pad, out_pad), jnp.bfloat16),
        grid=(n_tiles,),
        in_specs=[
            pl.BlockSpec((tile_b, state_size), lambda i: (i, 0)),  # x: streamed
            const(w1.shape),   # weights/biases pinned in VMEM (constant block idx)
            const(b1.shape),
            const(w2.shape),
            const(b2.shape),
            const(w3p.shape),
            const(b3p.shape),
        ],
        out_specs=pl.BlockSpec((tile_b, out_pad), lambda i: (i, 0)),
        compiler_params=pltpu.CompilerParams(
            dimension_semantics=("parallel",),        # shard tiles on v7x's 2 TCs
            vmem_limit_bytes=32 * 1024 * 1024,        # fits all generations
        ),
    )(x, w1, b1, w2, b2, w3p, b3p)

    return out[:B, :action_size].astype(jnp.float32)


def init_dqn_params(key, state_size=4, action_size=5, hidden=64):
    """Deterministic init mimicking PyTorch nn.Linear default
    (U[-1/sqrt(fan_in), +1/sqrt(fan_in)]).

    Weights are returned transposed to [in, out] and cast to bf16 (MXU-native);
    biases stay f32. The final layer's weight/bias are zero-padded along the
    output dim to 128 columns so the kernel's output store is lane-dense.
    """
    ks = jax.random.split(key, 6)

    def linear(kw, kb, fan_in, fan_out):
        bound = 1.0 / jnp.sqrt(jnp.float32(fan_in))
        w = jax.random.uniform(kw, (fan_in, fan_out), jnp.float32, -bound, bound)
        b = jax.random.uniform(kb, (1, fan_out), jnp.float32, -bound, bound)
        return w, b

    w1, b1 = linear(ks[0], ks[1], state_size, hidden)
    w2, b2 = linear(ks[2], ks[3], hidden, hidden)
    w3, b3 = linear(ks[4], ks[5], hidden, action_size)

    # Zero-pad last layer to a full 128-lane output (padded Q columns are 0).
    w3p = jnp.zeros((hidden, _LANE), jnp.float32).at[:, :action_size].set(w3)
    b3p = jnp.zeros((1, _LANE), jnp.float32).at[:, :action_size].set(b3)

    return (
        w1.astype(jnp.bfloat16), b1,
        w2.astype(jnp.bfloat16), b2,
        w3p.astype(jnp.bfloat16), b3p,
    )


def dqn_reference(x, w1, b1, w2, b2, w3p, b3p, *, action_size):
    """Plain-JAX f32 reference for correctness checking."""
    h1 = jnp.maximum(x @ w1.astype(jnp.float32) + b1, 0.0)
    h2 = jnp.maximum(h1 @ w2.astype(jnp.float32) + b2, 0.0)
    return (h2 @ w3p.astype(jnp.float32) + b3p)[:, :action_size]


if __name__ == "__main__":
    key = jax.random.PRNGKey(0)
    k_params, k_x1, k_x2 = jax.random.split(key, 3)

    state_size, action_size = 4, 5
    params = init_dqn_params(k_params, state_size=state_size, action_size=action_size)

    # bf16 matmul/output path -> compare against f32 reference with loose tol.
    ATOL, RTOL = 3e-2, 3e-2

    # Small batch (single-tile path).
    x_small = jax.random.normal(k_x1, (2, state_size), jnp.float32)
    q_small = jax.block_until_ready(
        dqn_forward(x_small, *params, action_size=action_size))
    q_small_ref = dqn_reference(x_small, *params, action_size=action_size)
    assert q_small.shape == (2, action_size), q_small.shape
    assert jnp.allclose(q_small, q_small_ref, atol=ATOL, rtol=RTOL)

    # Larger batch (multi-tile grid path; >= 2 tiles for dual-TC sharding).
    x_big = jax.random.normal(k_x2, (512, state_size), jnp.float32)
    q_big = jax.block_until_ready(
        dqn_forward(x_big, *params, action_size=action_size))
    q_big_ref = dqn_reference(x_big, *params, action_size=action_size)
    assert q_big.shape == (512, action_size), q_big.shape
    assert jnp.allclose(q_big, q_big_ref, atol=ATOL, rtol=RTOL)

    print("KERNEL_OK")
</pallas_src>

<mosaic_0001>
module attributes {stable_mosaic.version = 11 : i64} {
  func.func @_dqn_kernel(%arg0: i32, %arg1: memref<16x4xf32, #tpu.memory_space<vmem>>, %arg2: memref<4x64xbf16, #tpu.memory_space<vmem>>, %arg3: memref<1x64xf32, #tpu.memory_space<vmem>>, %arg4: memref<64x64xbf16, #tpu.memory_space<vmem>>, %arg5: memref<1x64xf32, #tpu.memory_space<vmem>>, %arg6: memref<64x128xbf16, #tpu.memory_space<vmem>>, %arg7: memref<1x128xf32, #tpu.memory_space<vmem>>, %arg8: memref<16x128xbf16, #tpu.memory_space<vmem>>) attributes {dimension_semantics = [#tpu.dimension_semantics<parallel>], iteration_bounds = array<i64: 1>, scalar_prefetch = 0 : i64, scratch_operands = 0 : i64, tpu.core_type = #tpu.core_type<tc>, window_params = [{transform_indices = @transform_0, window_bounds = array<i64: 16, 4>}, {pipeline_mode = #tpu.pipeline_mode<synchronous>, transform_indices = @transform_1, window_bounds = array<i64: 4, 64>}, {pipeline_mode = #tpu.pipeline_mode<synchronous>, transform_indices = @transform_2, window_bounds = array<i64: 1, 64>}, {pipeline_mode = #tpu.pipeline_mode<synchronous>, transform_indices = @transform_3, window_bounds = array<i64: 64, 64>}, {pipeline_mode = #tpu.pipeline_mode<synchronous>, transform_indices = @transform_4, window_bounds = array<i64: 1, 64>}, {pipeline_mode = #tpu.pipeline_mode<synchronous>, transform_indices = @transform_5, window_bounds = array<i64: 64, 128>}, {pipeline_mode = #tpu.pipeline_mode<synchronous>, transform_indices = @transform_6, window_bounds = array<i64: 1, 128>}, {transform_indices = @transform_7, window_bounds = array<i64: 16, 128>}]} {
    %c0 = arith.constant 0 : index
    %c0_0 = arith.constant 0 : index
    %0 = vector.load %arg1[%c0, %c0_0] : memref<16x4xf32, #tpu.memory_space<vmem>>, vector<16x4xf32>
    %1 = arith.truncf %0 : vector<16x4xf32> to vector<16x4xbf16>
    %c0_1 = arith.constant 0 : index
    %c0_2 = arith.constant 0 : index
    %2 = vector.load %arg2[%c0_1, %c0_2] : memref<4x64xbf16, #tpu.memory_space<vmem>>, vector<4x64xbf16>
    %cst = arith.constant dense<0.000000e+00> : vector<16x64xf32>
    %3 = tpu.matmul %1, %2, %cst {dimension_numbers = #tpu.dot_dimension_numbers<[1], [0], [0], [1], [0, 0, 1, 1], [], []>} : vector<16x4xbf16>, vector<4x64xbf16>, vector<16x64xf32> -> vector<16x64xf32>
    %c0_3 = arith.constant 0 : index
    %c0_4 = arith.constant 0 : index
    %4 = vector.load %arg3[%c0_3, %c0_4] : memref<1x64xf32, #tpu.memory_space<vmem>>, vector<1x64xf32>
    %5 = vector.broadcast %4 : vector<1x64xf32> to vector<16x64xf32>
    %6 = arith.addf %3, %5 : vector<16x64xf32>
    %cst_5 = arith.constant 0.000000e+00 : f32
    %7 = vector.broadcast %cst_5 : f32 to vector<16x64xf32>
    %8 = arith.maximumf %6, %7 : vector<16x64xf32>
    %9 = arith.truncf %8 : vector<16x64xf32> to vector<16x64xbf16>
    %c0_6 = arith.constant 0 : index
    %c0_7 = arith.constant 0 : index
    %10 = vector.load %arg4[%c0_6, %c0_7] : memref<64x64xbf16, #tpu.memory_space<vmem>>, vector<64x64xbf16>
    %cst_8 = arith.constant dense<0.000000e+00> : vector<16x64xf32>
    %11 = tpu.matmul %9, %10, %cst_8 {dimension_numbers = #tpu.dot_dimension_numbers<[1], [0], [0], [1], [0, 0, 1, 1], [], []>} : vector<16x64xbf16>, vector<64x64xbf16>, vector<16x64xf32> -> vector<16x64xf32>
    %c0_9 = arith.constant 0 : index
    %c0_10 = arith.constant 0 : index
    %12 = vector.load %arg5[%c0_9, %c0_10] : memref<1x64xf32, #tpu.memory_space<vmem>>, vector<1x64xf32>
    %13 = vector.broadcast %12 : vector<1x64xf32> to vector<16x64xf32>
    %14 = arith.addf %11, %13 : vector<16x64xf32>
    %cst_11 = arith.constant 0.000000e+00 : f32
    %15 = vector.broadcast %cst_11 : f32 to vector<16x64xf32>
    %16 = arith.maximumf %14, %15 : vector<16x64xf32>
    %17 = arith.truncf %16 : vector<16x64xf32> to vector<16x64xbf16>
    %c0_12 = arith.constant 0 : index
    %c0_13 = arith.constant 0 : index
    %18 = vector.load %arg6[%c0_12, %c0_13] : memref<64x128xbf16, #tpu.memory_space<vmem>>, vector<64x128xbf16>
    %cst_14 = arith.constant dense<0.000000e+00> : vector<16x128xf32>
    %19 = tpu.matmul %17, %18, %cst_14 {dimension_numbers = #tpu.dot_dimension_numbers<[1], [0], [0], [1], [0, 0, 1, 1], [], []>} : vector<16x64xbf16>, vector<64x128xbf16>, vector<16x128xf32> -> vector<16x128xf32>
    %c0_15 = arith.constant 0 : index
    %c0_16 = arith.constant 0 : index
    %20 = vector.load %arg7[%c0_15, %c0_16] : memref<1x128xf32, #tpu.memory_space<vmem>>, vector<1x128xf32>
    %21 = vector.broadcast %20 : vector<1x128xf32> to vector<16x128xf32>
    %22 = arith.addf %19, %21 : vector<16x128xf32>
    %23 = arith.truncf %22 : vector<16x128xf32> to vector<16x128xbf16>
    %c0_17 = arith.constant 0 : index
    %c0_18 = arith.constant 0 : index
    %24 = vector.load %arg8[%c0_17, %c0_18] : memref<16x128xbf16, #tpu.memory_space<vmem>>, vector<16x128xbf16>
    tpu.vector_store %arg8[%c0_17, %c0_18], %23 {strides = array<i32>} : memref<16x128xbf16, #tpu.memory_space<vmem>>, vector<16x128xbf16>,
    return
  }
  func.func @transform_0(%arg0: i32) -> (i32, i32) {
    %c0_i32 = arith.constant 0 : i32
    %c0_i32_0 = arith.constant 0 : i32
    return %arg0, %c0_i32 : i32, i32
  }
  func.func @transform_1(%arg0: i32) -> (i32, i32) {
    %c0_i32 = arith.constant 0 : i32
    %c0_i32_0 = arith.constant 0 : i32
    %c0_i32_1 = arith.constant 0 : i32
    return %c0_i32, %c0_i32_0 : i32, i32
  }
  func.func @transform_2(%arg0: i32) -> (i32, i32) {
    %c0_i32 = arith.constant 0 : i32
    %c0_i32_0 = arith.constant 0 : i32
    %c0_i32_1 = arith.constant 0 : i32
    return %c0_i32, %c0_i32_0 : i32, i32
  }
  func.func @transform_3(%arg0: i32) -> (i32, i32) {
    %c0_i32 = arith.constant 0 : i32
    %c0_i32_0 = arith.constant 0 : i32
    %c0_i32_1 = arith.constant 0 : i32
    return %c0_i32, %c0_i32_0 : i32, i32
  }
  func.func @transform_4(%arg0: i32) -> (i32, i32) {
    %c0_i32 = arith.constant 0 : i32
    %c0_i32_0 = arith.constant 0 : i32
    %c0_i32_1 = arith.constant 0 : i32
    return %c0_i32, %c0_i32_0 : i32, i32
  }
  func.func @transform_5(%arg0: i32) -> (i32, i32) {
    %c0_i32 = arith.constant 0 : i32
    %c0_i32_0 = arith.constant 0 : i32
    %c0_i32_1 = arith.constant 0 : i32
    return %c0_i32, %c0_i32_0 : i32, i32
  }
  func.func @transform_6(%arg0: i32) -> (i32, i32) {
    %c0_i32 = arith.constant 0 : i32
    %c0_i32_0 = arith.constant 0 : i32
    %c0_i32_1 = arith.constant 0 : i32
    return %c0_i32, %c0_i32_0 : i32, i32
  }
  func.func @transform_7(%arg0: i32) -> (i32, i32) {
    %c0_i32 = arith.constant 0 : i32
    %c0_i32_0 = arith.constant 0 : i32
    return %arg0, %c0_i32 : i32, i32
  }
}

</mosaic_0001>

<llo_original>
// kernel: dqn_forward.1
$region0: #{dqn_forward.1}
  #allocation0 [shape = 'u32[]', space=smem, size = 0x4, offset = 0x4, fixed_abs, tag = 'smem constant byte address 0x4 - core index']
  #allocation1 [shape = 'u32[144,128]{1,0:T(1,128)}', space=vmem, size = 0x12000, scoped, tag = 'internal scratch']
  %s0 = inlined_call_operand.vmem [shape: f32[16,4], index: 0, kind: input, shape index: {}]
  %s1 = inlined_call_operand.vmem [shape: bf16[4,64], index: 1, kind: input, shape index: {}]
  %s2 = inlined_call_operand.vmem [shape: f32[1,64], index: 2, kind: input, shape index: {}]
  %s3 = inlined_call_operand.hbm [shape: bf16[64,64], index: 3, kind: input, shape index: {}]
  %s4 = inlined_call_operand.vmem [shape: f32[1,64], index: 4, kind: input, shape index: {}]
  %s5 = inlined_call_operand.vmem [shape: bf16[64,128], index: 5, kind: input, shape index: {}]
  %s6 = inlined_call_operand.vmem [shape: f32[1,128], index: 6, kind: input, shape index: {}]
  %s7 = inlined_call_operand.vmem [shape: bf16[16,128], index: 7, kind: output, shape index: {}]
  %s8 = sld [smem:[#allocation0]]
  $region42: #{dqn_forward.1} parent=0
    _
  %s10 = ssub.s32 1, %s8
  %s11 = scalar_select 0, %s10, %s8
  $region1: #{dqn_forward.1} parent=0
    #allocation2 [shape = 'u8[16384]{0}', space=vmem, size = 0x4000, scoped, tag = 'input window, operand 3, single buffered']
    #allocation3 [shape = 's32[1]{0}', space=sflag, size = 0x4, scoped, tag = 'scoped memory for dqn_forward.1']
    %12 = vsyncpa [#allocation3], 0
    // Predicated region
    $region2: #{dqn_forward.1} parent=1 // pred_check
      _
    $region3: #{dqn_forward.1} parent=1 // pred_check_branch
      %14 = sbr.rel (0) target = $region5
    $region4: #{dqn_forward.1} parent=1 // pred_region
      _
    $region5: #{dqn_forward.1} parent=1 // pred_fallthru
      _
    // Predicated region
    $region6: #{dqn_forward.1} parent=1 // pred_check
      _
    $region7: #{dqn_forward.1} parent=1 // pred_check_branch
      %16 = sbr.rel (0) target = $region9
    $region8: #{dqn_forward.1} parent=1 // pred_region
      _
    $region9: #{dqn_forward.1} parent=1 // pred_fallthru
      _
    // Predicated region
    $region10: #{dqn_forward.1} parent=1 // pred_check
      _
    $region11: #{dqn_forward.1} parent=1 // pred_check_branch
      %18 = sbr.rel (0) target = $region13
    $region12: #{dqn_forward.1} parent=1 // pred_region
      _
    $region13: #{dqn_forward.1} parent=1 // pred_fallthru
      _
    // Predicated region
    $region14: #{dqn_forward.1} parent=1 // pred_check
      _
    $region15: #{dqn_forward.1} parent=1 // pred_check_branch
      %20 = sbr.rel (0) target = $region17
    $region16: #{dqn_forward.1} parent=1 // pred_region
      %s22 = ssub.s32 512, 512
      %23 = vsyncadd [#allocation3], %s22
      %s24 = sshll.u32 [#allocation2], 4
      %s25 = int_to_ptr.vmem [resolvable:$true] %s24
      %30 = dma.hbm_to_vmem [thread:$0]  %s3, 512, %s25, [#allocation3], 64, 64, 4
    $region17: #{dqn_forward.1} parent=1 // pred_fallthru
      _
    // Predicated region
    $region18: #{dqn_forward.1} parent=1 // pred_check
      _
    $region19: #{dqn_forward.1} parent=1 // pred_check_branch
      %32 = sbr.rel (0) target = $region21
    $region20: #{dqn_forward.1} parent=1 // pred_region
      _
    $region21: #{dqn_forward.1} parent=1 // pred_fallthru
      _
    // Predicated region
    $region22: #{dqn_forward.1} parent=1 // pred_check
      _
    $region23: #{dqn_forward.1} parent=1 // pred_check_branch
      %34 = sbr.rel (0) target = $region25
    $region24: #{dqn_forward.1} parent=1 // pred_region
      _
    $region25: #{dqn_forward.1} parent=1 // pred_fallthru
      _
    // Predicated region
    $region26: #{dqn_forward.1} parent=1 // pred_check
      _
    $region27: #{dqn_forward.1} parent=1 // pred_check_branch
      %36 = sbr.rel (0) target = $region29
    $region28: #{dqn_forward.1} parent=1 // pred_region
      _
    $region29: #{dqn_forward.1} parent=1 // pred_fallthru
      _
    // Predicated region
    $region30: #{dqn_forward.1} parent=1 // pred_check
      _
    $region31: #{dqn_forward.1} parent=1 // pred_check_branch
      %38 = sbr.rel (0) target = $region33
    $region32: #{dqn_forward.1} parent=1 // pred_region
      %39 = dma.done [#allocation3], 512
    $region33: #{dqn_forward.1} parent=1 // pred_fallthru
      _
    %v41 = vld [vmem:[%s0] sm:$0xff]
    %v42 = vld [vmem:[%s0 + $0x8] sm:$0xff]
    %v43 = vpack.c.bf16 %v42, %v41
    %v44 = vld [vmem:[%s1] sm:$0x3]
    %v45 = vld [vmem:[%s2] sm:$0x1]
    %v47 = vlaneseq
    %v48 = vshrl.u32 %v47, 7
    %v49 = vsub.s32 0, %v48
    %v50 = vrot.slane %v45, %v49
    %vm52 = vcmask 31744
    %v54 = vsel %vm52, %v43, 0
    %vm56 = vcmask 1041408
    %v58 = vsel %vm56, %v44, 0
    %60 = vmatprep.subr.bf16.mxu0 0
    %61 = vmatpush1.bf16.msra.mxu0 %v58
    %62 = vmatprep.subr.bf16.mxu0 0
    %63 = vmatpush1.bf16.msra.mxu0 0
    %64 = vmatprep.subr.bf16.mxu0 0
    %65 = vmatpush1.bf16.msra.mxu0 0
    %66 = vmatprep.subr.bf16.mxu0 0
    %67 = vmatpush1.bf16.msra.mxu0 0
    %68 = vmatprep.subr.bf16.mxu0 0
    %69 = vmatpush1.bf16.msra.mxu0 0
    %70 = vmatprep.subr.bf16.mxu0 0
    %71 = vmatpush1.bf16.msra.mxu0 0
    %72 = vmatprep.subr.bf16.mxu0 0
    %73 = vmatpush1.bf16.msra.mxu0 0
    %74 = vmatprep.subr.bf16.mxu0 0
    %75 = vmatpush1.bf16.msra.mxu0 0
    %76 = vmatprep.subr.bf16.mxu0 0
    %77 = vmatpush1.bf16.msra.mxu0 0
    %78 = vmatprep.subr.bf16.mxu0 0
    %79 = vmatpush1.bf16.msra.mxu0 0
    %80 = vmatprep.subr.bf16.mxu0 0
    %81 = vmatpush1.bf16.msra.mxu0 0
    %82 = vmatprep.subr.bf16.mxu0 0
    %83 = vmatpush1.bf16.msra.mxu0 0
    %84 = vmatprep.subr.bf16.mxu0 0
    %85 = vmatpush1.bf16.msra.mxu0 0
    %86 = vmatprep.subr.bf16.mxu0 0
    %87 = vmatpush1.bf16.msra.mxu0 0
    %88 = vmatprep.subr.bf16.mxu0 0
    %89 = vmatpush1.bf16.msra.mxu0 0
    %90 = vmatprep.subr.bf16.mxu0 0
    %91 = vmatpush1.bf16.msra.mxu0 0
    %92 = vmatprep.mubr.bf16.mxu0 0
    %93 = vmatmul.mubr.bf16.gmra.mrb[0].mxu0 %v54
    %v94 = vpop.f32.mrb[0].mxu0
    %v95 = vadd.f32 %v50, %v94
    %v96 = vpop.f32.mrb[0].mxu0
    %v97 = vpop.f32.mrb[0].mxu0
    %v98 = vadd.f32 %v50, %v97
    %v99 = vpop.f32.mrb[0].mxu0
    %100 = vdwg.mxu0
    %v101 = vmax.f32 %v95, 0.0
    %v102 = vmax.f32 %v98, 0.0
    %v103 = vpack.c.bf16 %v102, %v101
    %v104 = vld [vmem:[#allocation2] sm:$0xf]
    %v105 = vld [vmem:[#allocation2 + $0x4] sm:$0xf]
    %v106 = vld [vmem:[#allocation2 + $0x8] sm:$0xf]
    %v107 = vld [vmem:[#allocation2 + $0xc] sm:$0xf]
    %v108 = vld [vmem:[#allocation2 + $0x10] sm:$0xf]
    %v109 = vld [vmem:[#allocation2 + $0x14] sm:$0xf]
    %v110 = vld [vmem:[#allocation2 + $0x18] sm:$0xf]
    %v111 = vld [vmem:[#allocation2 + $0x1c] sm:$0xf]
    %v112 = vld [vmem:[%s4] sm:$0x1]
    %v114 = vlaneseq
    %v115 = vshrl.u32 %v114, 7
    %v116 = vsub.s32 0, %v115
    %v117 = vrot.slane %v112, %v116
    %v127 = vunpack.c.l.b16 %v104
    %v128 = vunpack.c.l.b16 %v105
    %v129 = vunpack.c.l.b16 %v106
    %v130 = vunpack.c.l.b16 %v107
    %v131 = vunpack.c.l.b16 %v108
    %v132 = vunpack.c.l.b16 %v109
    %v133 = vunpack.c.l.b16 %v110
    %v134 = vunpack.c.l.b16 %v111
    %v135 = vpack.c.b16 %v128, %v127
    %v136 = vpack.c.b16 %v130, %v129
    %v137 = vpack.c.b16 %v132, %v131
    %v138 = vpack.c.b16 %v134, %v133
    %vm143 = vcmask 523264
    %v145 = vsel %vm143, %v103, 0
    %147 = vmatprep.subr.bf16.mxu0 0
    %148 = vmatpush1.bf16.msra.mxu0 %v135
    %149 = vmatprep.subr.bf16.mxu0 0
    %150 = vmatpush1.bf16.msra.mxu0 %v136
    %151 = vmatprep.subr.bf16.mxu0 0
    %152 = vmatpush1.bf16.msra.mxu0 %v137
    %153 = vmatprep.subr.bf16.mxu0 0
    %154 = vmatpush1.bf16.msra.mxu0 %v138
    %155 = vmatprep.subr.bf16.mxu0 0
    %156 = vmatpush1.bf16.msra.mxu0 0
    %157 = vmatprep.subr.bf16.mxu0 0
    %158 = vmatpush1.bf16.msra.mxu0 0
    %159 = vmatprep.subr.bf16.mxu0 0
    %160 = vmatpush1.bf16.msra.mxu0 0
    %161 = vmatprep.subr.bf16.mxu0 0
    %162 = vmatpush1.bf16.msra.mxu0 0
    %163 = vmatprep.subr.bf16.mxu0 0
    %164 = vmatpush1.bf16.msra.mxu0 0
    %165 = vmatprep.subr.bf16.mxu0 0
    %166 = vmatpush1.bf16.msra.mxu0 0
    %167 = vmatprep.subr.bf16.mxu0 0
    %168 = vmatpush1.bf16.msra.mxu0 0
    %169 = vmatprep.subr.bf16.mxu0 0
    %170 = vmatpush1.bf16.msra.mxu0 0
    %171 = vmatprep.subr.bf16.mxu0 0
    %172 = vmatpush1.bf16.msra.mxu0 0
    %173 = vmatprep.subr.bf16.mxu0 0
    %174 = vmatpush1.bf16.msra.mxu0 0
    %175 = vmatprep.subr.bf16.mxu0 0
    %176 = vmatpush1.bf16.msra.mxu0 0
    %177 = vmatprep.subr.bf16.mxu0 0
    %178 = vmatpush1.bf16.msra.mxu0 0
    %179 = vmatprep.mubr.bf16.mxu0 0
    %180 = vmatmul.mubr.bf16.gmra.mrb[0].mxu0 %v145
    %v181 = vpop.f32.mrb[0].mxu0
    %v182 = vadd.f32 %v117, %v181
    %v183 = vpop.f32.mrb[0].mxu0
    %v184 = vpop.f32.mrb[0].mxu0
    %v185 = vadd.f32 %v117, %v184
    %v186 = vpop.f32.mrb[0].mxu0
    %187 = vdwg.mxu0
    %v188 = vmax.f32 %v182, 0.0
    %v189 = vmax.f32 %v185, 0.0
    %v190 = vpack.c.bf16 %v189, %v188
    %v191 = vld [vmem:[%s5] sm:$0xf]
    %v192 = vld [vmem:[%s5 + $0x4] sm:$0xf]
    %v193 = vld [vmem:[%s5 + $0x8] sm:$0xf]
    %v194 = vld [vmem:[%s5 + $0xc] sm:$0xf]
    %v195 = vld [vmem:[%s5 + $0x10] sm:$0xf]
    %v196 = vld [vmem:[%s5 + $0x14] sm:$0xf]
    %v197 = vld [vmem:[%s5 + $0x18] sm:$0xf]
    %v198 = vld [vmem:[%s5 + $0x1c] sm:$0xf]
    %v199 = vld [vmem:[%s6] sm:$0x1]
    %v201 = vlaneseq
    %v202 = vshrl.u32 %v201, 7
    %v203 = vsub.s32 0, %v202
    %v204 = vrot.slane %v199, %v203
    %v214 = vunpack.c.l.b16 %v191
    %v215 = vunpack.c.l.b16 %v192
    %v216 = vunpack.c.l.b16 %v193
    %v217 = vunpack.c.l.b16 %v194
    %v218 = vunpack.c.l.b16 %v195
    %v219 = vunpack.c.l.b16 %v196
    %v220 = vunpack.c.l.b16 %v197
    %v221 = vunpack.c.l.b16 %v198
    %v222 = vpack.c.b16 %v215, %v214
    %v223 = vpack.c.b16 %v217, %v216
    %v224 = vpack.c.b16 %v219, %v218
    %v225 = vpack.c.b16 %v221, %v220
    %v231 = vsel %vm143, %v190, 0
    %233 = vmatprep.subr.bf16.mxu0 0
    %234 = vmatpush1.bf16.msra.mxu0 %v222
    %235 = vmatprep.subr.bf16.mxu0 0
    %236 = vmatpush1.bf16.msra.mxu0 %v223
    %237 = vmatprep.subr.bf16.mxu0 0
    %238 = vmatpush1.bf16.msra.mxu0 %v224
    %239 = vmatprep.subr.bf16.mxu0 0
    %240 = vmatpush1.bf16.msra.mxu0 %v225
    %241 = vmatprep.subr.bf16.mxu0 0
    %242 = vmatpush1.bf16.msra.mxu0 0
    %243 = vmatprep.subr.bf16.mxu0 0
    %244 = vmatpush1.bf16.msra.mxu0 0
    %245 = vmatprep.subr.bf16.mxu0 0
    %246 = vmatpush1.bf16.msra.mxu0 0
    %247 = vmatprep.subr.bf16.mxu0 0
    %248 = vmatpush1.bf16.msra.mxu0 0
    %249 = vmatprep.subr.bf16.mxu0 0
    %250 = vmatpush1.bf16.msra.mxu0 0
    %251 = vmatprep.subr.bf16.mxu0 0
    %252 = vmatpush1.bf16.msra.mxu0 0
    %253 = vmatprep.subr.bf16.mxu0 0
    %254 = vmatpush1.bf16.msra.mxu0 0
    %255 = vmatprep.subr.bf16.mxu0 0
    %256 = vmatpush1.bf16.msra.mxu0 0
    %257 = vmatprep.subr.bf16.mxu0 0
    %258 = vmatpush1.bf16.msra.mxu0 0
    %259 = vmatprep.subr.bf16.mxu0 0
    %260 = vmatpush1.bf16.msra.mxu0 0
    %261 = vmatprep.subr.bf16.mxu0 0
    %262 = vmatpush1.bf16.msra.mxu0 0
    %263 = vmatprep.subr.bf16.mxu0 0
    %264 = vmatpush1.bf16.msra.mxu0 0
    %265 = vmatprep.mubr.bf16.mxu0 0
    %266 = vmatmul.mubr.bf16.gmra.mrb[0].mxu0 %v231
    %v267 = vpop.f32.mrb[0].mxu0
    %v268 = vadd.f32 %v204, %v267
    %v269 = vpop.f32.mrb[0].mxu0
    %v270 = vpop.f32.mrb[0].mxu0
    %v271 = vadd.f32 %v204, %v270
    %v272 = vpop.f32.mrb[0].mxu0
    %273 = vdwg.mxu0
    %v274 = vpack.c.bf16 %v271, %v268
    %v276 = vunpack.c.l.b16 %v274
    %v277 = vunpack.c.h.b16 %v274
    %v278 = vpack.c.b16 %v276, %v276
    %v279 = vpack.c.b16 %v277, %v277
    %282 = vst [vmem:[%s7] sm:$0xf] %v278
    %283 = vst [vmem:[%s7 + $0x4] sm:$0xf] %v279
    // Predicated region
    $region34: #{dqn_forward.1} parent=1 // pred_check
      _
    $region35: #{dqn_forward.1} parent=1 // pred_check_branch
      %285 = sbr.rel (0) target = $region37
    $region36: #{dqn_forward.1} parent=1 // pred_region
      _
    $region37: #{dqn_forward.1} parent=1 // pred_fallthru
      _
    // Predicated region
    $region38: #{dqn_forward.1} parent=1 // pred_check
      _
    $region39: #{dqn_forward.1} parent=1 // pred_check_branch
      %287 = sbr.rel (0) target = $region41
    $region40: #{dqn_forward.1} parent=1 // pred_region
      _
    $region41: #{dqn_forward.1} parent=1 // pred_fallthru
      _
    %288 = vsyncpa [#allocation3], 1

</llo_original>
